<compile_context>
chip_gen: v6e
topology: v6e:2x2x1
jax: 0.10.0
libtpu: 0.0.40
codegen_flags: <defaults>
</compile_context>

<pallas_src>
import functools

import jax
import jax.numpy as jnp
from jax import lax
from jax.experimental import pallas as pl
from jax.experimental.pallas import tpu as pltpu


# ----------------------------- Pallas kernel --------------------------------

def _ckn_project_kernel(p_ref, w_ref, nz_ref, o_ref, *, eps2):
    # p_ref : (D, TM) bf16  patch columns, TM on lanes (dense loads)
    # w_ref : (K, D)  bf16  filters pre-scaled by 1/sigma^2
    # nz_ref: (K, K)  bf16  (k(WW^T)+reg I)^{-1/2} pre-scaled by exp(-1/sigma^2)
    # o_ref : (K, TM) bf16  projected patches, TM on lanes (dense stores)
    p = p_ref[...]                                    # bf16, stays bf16
    w = w_ref[...]
    nz = nz_ref[...]

    # ||p||^2 per column on the MXU (f32 accumulate, XLU stays free).
    ones_row = jnp.ones((1, p.shape[0]), dtype=p.dtype)
    sumsq = jnp.dot(ones_row, p * p,
                    preferred_element_type=jnp.float32)          # (1, TM)
    sumsq = jnp.maximum(sumsq, eps2)
    rn = lax.rsqrt(sumsq)                                        # 1/||p|| (clamped)
    n = sumsq * rn                                               # ||p||   (clamped)

    # exp((<w, p/n> - 1)/sigma^2): sigma^2 folded into w, exp(-1/sigma^2) into nz.
    s = jnp.dot(w, p, preferred_element_type=jnp.float32)        # (K, TM) bf16 MXU
    e = jnp.exp(s * rn).astype(nz.dtype)                         # f32 EUP -> bf16

    proj = jnp.dot(nz, e, preferred_element_type=jnp.float32)    # (K, TM)
    o_ref[...] = (proj * n).astype(o_ref.dtype)


def _pick_row_tile(P, tm_max=4096, tm_min=256, min_steps=4):
    """Largest lane tile (multiple of 128) keeping a few grid steps; prefer an
    even step count so the parallel axis balances across 2 TensorCores."""
    tm = tm_max
    while tm > tm_min and pl.cdiv(P, tm) < min_steps:
        tm //= 2
    if tm > tm_min and pl.cdiv(P, tm) % 2 == 1 and pl.cdiv(P, tm // 2) % 2 == 0:
        tm //= 2
    return tm


def ckn_project(patches_t, w_scaled, nz_scaled, *, tm=None, eps=1e-10,
                out_dtype=jnp.bfloat16):
    """patches_t: (D, P) bf16, w_scaled: (K, D), nz_scaled: (K, K) -> (K, P)."""
    D, P = patches_t.shape
    K = w_scaled.shape[0]
    if tm is None:
        tm = _pick_row_tile(P)

    kernel = functools.partial(_ckn_project_kernel, eps2=float(eps) ** 2)

    return pl.pallas_call(
        kernel,
        out_shape=jax.ShapeDtypeStruct((K, P), out_dtype),
        grid_spec=pltpu.PrefetchScalarGridSpec(
            num_scalar_prefetch=0,
            grid=(pl.cdiv(P, tm),),                   # partial last block OK:
            in_specs=[                                # every op is column-local
                pl.BlockSpec((D, tm), lambda i: (0, i)),   # patch columns
                pl.BlockSpec((K, D), lambda i: (0, 0)),    # W' (resident)
                pl.BlockSpec((K, K), lambda i: (0, 0)),    # nz' (resident)
            ],
            out_specs=pl.BlockSpec((K, tm), lambda i: (0, i)),
        ),
        compiler_params=pltpu.CompilerParams(
            dimension_semantics=("parallel",)),
    )(patches_t, w_scaled, nz_scaled)


# ------------------------------ JAX glue -------------------------------------

def images_to_patches_t(f, patch_size, stride=(1, 1), padding=0,
                        out_dtype=jnp.bfloat16):
    """im2col (transposed).  f: (B, C, H, W) -> (C*ph*pw, B*Hn*Wn).

    Feature index c*ph*pw + dy*pw + dx (torch unfold order); patch index is
    row-major over (b, y, x).  bf16 output halves patch-tensor HBM traffic.
    """
    # TODO(synk): whiten=True path of utils.images_to_patches not implemented.
    # TODO(synk): fuse this im2col into the Pallas kernel (pl.ANY + manual DMA)
    # to avoid materializing the ~9x patch tensor in HBM.
    if padding:
        f = jnp.pad(f, ((0, 0), (0, 0), (padding, padding), (padding, padding)))
    B, C, H, W = f.shape
    ph, pw = patch_size
    sh, sw = stride
    Hn = (H - ph) // sh + 1
    Wn = (W - pw) // sw + 1
    cols = []
    for dy in range(ph):
        for dx in range(pw):
            cols.append(f[:, :, dy:dy + sh * Hn:sh, dx:dx + sw * Wn:sw])
    patches = jnp.stack(cols, axis=0)                       # (ph*pw, B, C, Hn, Wn)
    patches = jnp.transpose(patches, (2, 0, 1, 3, 4))       # (C, ph*pw, B, Hn, Wn)
    patches_t = patches.reshape(C * ph * pw, B * Hn * Wn).astype(out_dtype)
    return patches_t, (B, Hn, Wn)


def prepare_ckn_params(W, patch_sigma, kww_reg=0.001, eps=1e-12,
                       param_dtype=jnp.bfloat16):
    """Fold RBF constants into the small matrices; hoisted out of the hot path.

    Returns (W/sigma^2, (k(WW^T)+reg I)^{-1/2} * exp(-1/sigma^2)) in bf16.
    """
    # TODO(synk): reference uses Newton iterations (stable_newton_with_newton)
    # for the inverse sqrt; the exact eigh-based inverse sqrt matches the
    # converged result (assumes unit-norm filter rows for the sphere kernel).
    W = W.astype(jnp.float32)
    inv_sigma2 = 1.0 / (patch_sigma ** 2)
    gram = jnp.exp((W @ W.T - 1.0) * inv_sigma2)
    A = gram + kww_reg * jnp.eye(W.shape[0], dtype=jnp.float32)
    evals, evecs = jnp.linalg.eigh(A)
    inv_sqrt = 1.0 / jnp.sqrt(jnp.maximum(evals, eps))
    nz = (evecs * inv_sqrt[None, :]) @ evecs.T
    w_scaled = (W * inv_sigma2).astype(param_dtype)
    nz_scaled = (nz * jnp.exp(-inv_sigma2)).astype(param_dtype)
    return w_scaled, nz_scaled


def average_pool_nchw(x, factor):
    """Average pooling + subsampling with window = stride = factor."""
    # TODO(synk): exact pool.Pool semantics unavailable; standard CKN average
    # pooling with kernel == stride == subsampling_factor is implemented.
    B, K, H, W = x.shape
    Hp, Wp = H // factor, W // factor
    x = x[:, :, :Hp * factor, :Wp * factor]
    x = x.reshape(B, K, Hp, factor, Wp, factor)
    return x.mean(axis=(3, 5))


def ckn_layer_forward(f, w_scaled, nz_scaled, *, patch_size, stride, padding,
                      subsampling_factor, patch_dtype=jnp.bfloat16):
    patches_t, (B, Hn, Wn) = images_to_patches_t(
        f, patch_size, stride, padding, out_dtype=patch_dtype)
    projected_t = ckn_project(patches_t, w_scaled, nz_scaled)   # (K, P) bf16
    # patches_to_images: (K, B*Hn*Wn) -> (B, K, Hn, Wn); pool accumulates in f32
    all_patches = jnp.transpose(projected_t.reshape(-1, B, Hn, Wn),
                                (1, 0, 2, 3)).astype(jnp.float32)
    return average_pool_nchw(all_patches, subsampling_factor)


# ------------------------------- main -----------------------------------------

if __name__ == "__main__":
    key = jax.random.PRNGKey(0)
    kx, kw = jax.random.split(key)

    # small shapes consistent with the module
    B, C, H, Wdim = 2, 4, 16, 16
    patch_size = (3, 3)
    stride = (1, 1)
    padding = 0
    n_filters = 32
    subsampling_factor = 2
    patch_sigma = 0.6
    kww_reg = 0.001

    x = jax.random.normal(kx, (B, C, H, Wdim), dtype=jnp.float32)

    # deterministic "spherical" filter init: unit-norm rows, shape (K, D)
    D = C * patch_size[0] * patch_size[1]
    W = jax.random.normal(kw, (n_filters, D), dtype=jnp.float32)
    W = W / jnp.linalg.norm(W, axis=1, keepdims=True)

    # invariant for fixed W -> hoisted out of the per-call jitted path
    w_scaled, nz_scaled = prepare_ckn_params(W, patch_sigma, kww_reg)
    w_scaled, nz_scaled = jax.block_until_ready((w_scaled, nz_scaled))

    fwd = jax.jit(functools.partial(
        ckn_layer_forward,
        patch_size=patch_size, stride=stride, padding=padding,
        subsampling_factor=subsampling_factor))

    out = fwd(x, w_scaled, nz_scaled)
    jax.block_until_ready(out)
    assert out.shape == (B, n_filters, (H - 2) // 2, (Wdim - 2) // 2), out.shape
    print("KERNEL_OK")
</pallas_src>

<mosaic_0001>
module attributes {stable_mosaic.version = 11 : i64} {
  func.func @_ckn_project_kernel(%arg0: i32, %arg1: memref<36x256xbf16, #tpu.memory_space<vmem>>, %arg2: memref<32x36xbf16, #tpu.memory_space<vmem>>, %arg3: memref<32x32xbf16, #tpu.memory_space<vmem>>, %arg4: memref<32x256xbf16, #tpu.memory_space<vmem>>) attributes {dimension_semantics = [#tpu.dimension_semantics<parallel>], iteration_bounds = array<i64: 2>, scalar_prefetch = 0 : i64, scratch_operands = 0 : i64, tpu.core_type = #tpu.core_type<tc>, window_params = [{transform_indices = @transform_0, window_bounds = array<i64: 36, 256>}, {pipeline_mode = #tpu.pipeline_mode<synchronous>, transform_indices = @transform_1, window_bounds = array<i64: 32, 36>}, {pipeline_mode = #tpu.pipeline_mode<synchronous>, transform_indices = @transform_2, window_bounds = array<i64: 32, 32>}, {transform_indices = @transform_3, window_bounds = array<i64: 32, 256>}]} {
    %c0 = arith.constant 0 : index
    %c0_0 = arith.constant 0 : index
    %0 = vector.load %arg1[%c0, %c0_0] : memref<36x256xbf16, #tpu.memory_space<vmem>>, vector<36x256xbf16>
    %c0_1 = arith.constant 0 : index
    %c0_2 = arith.constant 0 : index
    %1 = vector.load %arg2[%c0_1, %c0_2] : memref<32x36xbf16, #tpu.memory_space<vmem>>, vector<32x36xbf16>
    %c0_3 = arith.constant 0 : index
    %c0_4 = arith.constant 0 : index
    %2 = vector.load %arg3[%c0_3, %c0_4] : memref<32x32xbf16, #tpu.memory_space<vmem>>, vector<32x32xbf16>
    %cst = arith.constant 1.000000e+00 : bf16
    %3 = vector.broadcast %cst : bf16 to vector<1x36xbf16>
    %4 = arith.mulf %0, %0 : vector<36x256xbf16>
    %cst_5 = arith.constant dense<0.000000e+00> : vector<1x256xf32>
    %5 = tpu.matmul %3, %4, %cst_5 {dimension_numbers = #tpu.dot_dimension_numbers<[1], [0], [0], [1], [0, 0, 1, 1], [], []>} : vector<1x36xbf16>, vector<36x256xbf16>, vector<1x256xf32> -> vector<1x256xf32>
    %cst_6 = arith.constant 9.99999968E-21 : f32
    %6 = vector.broadcast %cst_6 : f32 to vector<1x256xf32>
    %7 = arith.maximumf %5, %6 : vector<1x256xf32>
    %8 = math.rsqrt %7 : vector<1x256xf32>
    %9 = arith.mulf %7, %8 : vector<1x256xf32>
    %cst_7 = arith.constant dense<0.000000e+00> : vector<32x256xf32>
    %10 = tpu.matmul %1, %0, %cst_7 {dimension_numbers = #tpu.dot_dimension_numbers<[1], [0], [0], [1], [0, 0, 1, 1], [], []>} : vector<32x36xbf16>, vector<36x256xbf16>, vector<32x256xf32> -> vector<32x256xf32>
    %11 = vector.broadcast %8 : vector<1x256xf32> to vector<32x256xf32>
    %12 = arith.mulf %10, %11 : vector<32x256xf32>
    %13 = math.exp %12 : vector<32x256xf32>
    %14 = arith.truncf %13 : vector<32x256xf32> to vector<32x256xbf16>
    %cst_8 = arith.constant dense<0.000000e+00> : vector<32x256xf32>
    %15 = tpu.matmul %2, %14, %cst_8 {dimension_numbers = #tpu.dot_dimension_numbers<[1], [0], [0], [1], [0, 0, 1, 1], [], []>} : vector<32x32xbf16>, vector<32x256xbf16>, vector<32x256xf32> -> vector<32x256xf32>
    %16 = vector.broadcast %9 : vector<1x256xf32> to vector<32x256xf32>
    %17 = arith.mulf %15, %16 : vector<32x256xf32>
    %18 = arith.truncf %17 : vector<32x256xf32> to vector<32x256xbf16>
    %c0_9 = arith.constant 0 : index
    %c0_10 = arith.constant 0 : index
    %19 = vector.load %arg4[%c0_9, %c0_10] : memref<32x256xbf16, #tpu.memory_space<vmem>>, vector<32x256xbf16>
    tpu.vector_store %arg4[%c0_9, %c0_10], %18 {strides = array<i32>} : memref<32x256xbf16, #tpu.memory_space<vmem>>, vector<32x256xbf16>,
    return
  }
  func.func @transform_0(%arg0: i32) -> (i32, i32) {
    %c0_i32 = arith.constant 0 : i32
    %c0_i32_0 = arith.constant 0 : i32
    return %c0_i32, %arg0 : i32, i32
  }
  func.func @transform_1(%arg0: i32) -> (i32, i32) {
    %c0_i32 = arith.constant 0 : i32
    %c0_i32_0 = arith.constant 0 : i32
    %c0_i32_1 = arith.constant 0 : i32
    return %c0_i32, %c0_i32_0 : i32, i32
  }
  func.func @transform_2(%arg0: i32) -> (i32, i32) {
    %c0_i32 = arith.constant 0 : i32
    %c0_i32_0 = arith.constant 0 : i32
    %c0_i32_1 = arith.constant 0 : i32
    return %c0_i32, %c0_i32_0 : i32, i32
  }
  func.func @transform_3(%arg0: i32) -> (i32, i32) {
    %c0_i32 = arith.constant 0 : i32
    %c0_i32_0 = arith.constant 0 : i32
    return %c0_i32, %arg0 : i32, i32
  }
}

</mosaic_0001>

<llo_original>
// kernel: ckn_layer_forward.1
$region0: #{ckn_layer_forward.1}
  #allocation0 [shape = 'u32[]', space=smem, size = 0x4, offset = 0x4, fixed_abs, tag = 'smem constant byte address 0x4 - core index']
  #allocation1 [shape = 'u32[144,128]{1,0:T(1,128)}', space=vmem, size = 0x12000, scoped, tag = 'internal scratch']
  %s0 = inlined_call_operand.vmem [shape: bf16[36,392], index: 0, kind: input, shape index: {}]
  %s1 = inlined_call_operand.vmem [shape: bf16[32,36], index: 1, kind: input, shape index: {}]
  %s2 = inlined_call_operand.vmem [shape: bf16[32,32], index: 2, kind: input, shape index: {}]
  %s3 = inlined_call_operand.vmem [shape: bf16[32,392], index: 3, kind: output, shape index: {}]
  %s4 = sld [smem:[#allocation0]]
  $region117: #{ckn_layer_forward.1} parent=0
    _
  %s6 = ssub.s32 1, %s4
  %s7 = scalar_select 0, %s6, %s4
  $region1: #{ckn_layer_forward.1} parent=0
    #allocation2 [shape = 'u8[40960]{0}', space=vmem, size = 0xa000, scoped, tag = 'input window, operand 0']
    #allocation3 [shape = 'u8[32768]{0}', space=vmem, size = 0x8000, scoped, tag = 'output window, operand 0']
    loop: start=0, step=1, limit=4
    $region2: #{ckn_layer_forward.1} parent=1 // loop_pre_header
      _
    $region3: #{ckn_layer_forward.1} parent=1 // loop_header
      %s9 = sphi 0, %s13
      %p10 = scmp.ge.s32.totalorder %s9, 4
      %s19 = sphi 0, %s21
      %s22 = sphi 0, %s19
      %s23 = sphi 0, %s22
      %s39 = sphi 0, %s23
      %s43 = sphi 0, %s43
      %s45 = sphi 0, %s43
      %s46 = sphi 0, %s45
      %s60 = sphi 0, %s46
      %s64 = sphi 0, %s64
      %s66 = sphi 0, %s64
      %s67 = sphi 0, %s66
      %s81 = sphi 0, %s67
      %s87 = sphi 0, %s89
      %s90 = sphi 0, %s87
      %s91 = sphi 0, %s90
      %s107 = sphi 0, %s91
    $region4: #{ckn_layer_forward.1} parent=1 // loop_header_branch
      %12 = sbr.rel (%p10) target = $region8
    $region5: #{ckn_layer_forward.1} parent=1 // loop_body
      %s14 = ssub.s32 %s9, 1
      %s15 = ssub.s32 %s9, 2
      %s16 = sadd.s32 %s9, 1
      %s17 = ssub.s32 %s9, %s16
      %p18 = scmp.eq.s32.totalorder %s17, 0
      %s20 = sadd.s32 %s19, 1
      %s21 = scalar_select %p18, %s19, %s20
      %p24 = pneg %p18
      %p25 = scmp.eq.s32.totalorder %s9, 1
      %p26 = por %p24, %p25
      %p27 = scmp.ne.s32.totalorder %s19, %s22
      %p28 = scmp.eq.s32.totalorder %s9, 0
      %p29 = por %p27, %p28
      %p30 = scmp.ne.s32.totalorder %s19, %s22
      %p31 = scmp.eq.s32.totalorder %s14, 1
      %p32 = por %p30, %p31
      %p33 = scmp.ne.s32.totalorder %s22, %s23
      %p34 = scmp.eq.s32.totalorder %s14, 0
      %p35 = por %p33, %p34
      %p36 = scmp.ne.s32.totalorder %s22, %s23
      %p37 = scmp.eq.s32.totalorder %s15, 1
      %p38 = por %p36, %p37
      %p40 = scmp.ne.s32.totalorder %s23, %s39
      %p41 = scmp.eq.s32.totalorder %s15, 0
      %p42 = por %p40, %p41
      %s44 = sadd.s32 %s43, 1
      %p47 = scmp.eq.s32.totalorder %s9, 1
      %p48 = scmp.ne.s32.totalorder %s43, %s45
      %p49 = scmp.eq.s32.totalorder %s9, 0
      %p50 = por %p48, %p49
      %p51 = scmp.ne.s32.totalorder %s43, %s45
      %p52 = scmp.eq.s32.totalorder %s14, 1
      %p53 = por %p51, %p52
      %p54 = scmp.ne.s32.totalorder %s45, %s46
      %p55 = scmp.eq.s32.totalorder %s14, 0
      %p56 = por %p54, %p55
      %p57 = scmp.ne.s32.totalorder %s45, %s46
      %p58 = scmp.eq.s32.totalorder %s15, 1
      %p59 = por %p57, %p58
      %p61 = scmp.ne.s32.totalorder %s46, %s60
      %p62 = scmp.eq.s32.totalorder %s15, 0
      %p63 = por %p61, %p62
      %s65 = sadd.s32 %s64, 1
      %p68 = scmp.eq.s32.totalorder %s9, 1
      %p69 = scmp.ne.s32.totalorder %s64, %s66
      %p70 = scmp.eq.s32.totalorder %s9, 0
      %p71 = por %p69, %p70
      %p72 = scmp.ne.s32.totalorder %s64, %s66
      %p73 = scmp.eq.s32.totalorder %s14, 1
      %p74 = por %p72, %p73
      %p75 = scmp.ne.s32.totalorder %s66, %s67
      %p76 = scmp.eq.s32.totalorder %s14, 0
      %p77 = por %p75, %p76
      %p78 = scmp.ne.s32.totalorder %s66, %s67
      %p79 = scmp.eq.s32.totalorder %s15, 1
      %p80 = por %p78, %p79
      %p82 = scmp.ne.s32.totalorder %s67, %s81
      %p83 = scmp.eq.s32.totalorder %s15, 0
      %p84 = por %p82, %p83
      %s85 = ssub.s32 %s9, %s16
      %p86 = scmp.eq.s32.totalorder %s85, 0
      %s88 = sadd.s32 %s87, 1
      %s89 = scalar_select %p86, %s87, %s88
      %p92 = pneg %p86
      %p93 = scmp.eq.s32.totalorder %s9, 1
      %p94 = por %p92, %p93
      %p95 = scmp.ne.s32.totalorder %s87, %s90
      %p96 = scmp.eq.s32.totalorder %s9, 0
      %p97 = por %p95, %p96
      %p98 = scmp.ne.s32.totalorder %s87, %s90
      %p99 = scmp.eq.s32.totalorder %s14, 1
      %p100 = por %p98, %p99
      %p101 = scmp.ne.s32.totalorder %s90, %s91
      %p102 = scmp.eq.s32.totalorder %s14, 0
      %p103 = por %p101, %p102
      %p104 = scmp.ne.s32.totalorder %s90, %s91
      %p105 = scmp.eq.s32.totalorder %s15, 1
      %p106 = por %p104, %p105
      %p108 = scmp.ne.s32.totalorder %s91, %s107
      %p109 = scmp.eq.s32.totalorder %s15, 0
      %p110 = por %p108, %p109
      %p111 = scmp.le.s32.totalorder 1, %s9
      %p112 = scmp.lt.s32.totalorder %s9, 3
      %p113 = pnand %p111, %p112
      %p114 = pneg %p113
      // Predicated region
      $region9: #{ckn_layer_forward.1} parent=5 // pred_check
        _
      $region10: #{ckn_layer_forward.1} parent=5 // pred_check_branch
        %116 = sbr.rel (%p113) target = $region12
      $region11: #{ckn_layer_forward.1} parent=5 // pred_region
        %s117 = ssub.s32 %s9, 1
        // Predicated region
        $region13: #{ckn_layer_forward.1} parent=11 // pred_check
          %p118 = pneg %p56
        $region14: #{ckn_layer_forward.1} parent=11 // pred_check_branch
          %120 = sbr.rel (%p118) target = $region16
        $region15: #{ckn_layer_forward.1} parent=11 // pred_region
          _
        $region16: #{ckn_layer_forward.1} parent=11 // pred_fallthru
          _
        // Predicated region
        $region17: #{ckn_layer_forward.1} parent=11 // pred_check
          %p121 = pneg %p77
        $region18: #{ckn_layer_forward.1} parent=11 // pred_check_branch
          %123 = sbr.rel (%p121) target = $region20
        $region19: #{ckn_layer_forward.1} parent=11 // pred_region
          _
        $region20: #{ckn_layer_forward.1} parent=11 // pred_fallthru
          _
      $region12: #{ckn_layer_forward.1} parent=5 // pred_fallthru
        _
      %p124 = scmp.lt.s32.totalorder %s9, 2
      // Predicated region
      $region21: #{ckn_layer_forward.1} parent=5 // pred_check
        %p125 = pneg %p124
      $region22: #{ckn_layer_forward.1} parent=5 // pred_check_branch
        %127 = sbr.rel (%p125) target = $region24
      $region23: #{ckn_layer_forward.1} parent=5 // pred_region
        // Predicated region
        $region25: #{ckn_layer_forward.1} parent=23 // pred_check
          %p128 = pneg %p29
        $region26: #{ckn_layer_forward.1} parent=23 // pred_check_branch
          %130 = sbr.rel (%p128) target = $region28
        $region27: #{ckn_layer_forward.1} parent=23 // pred_region
          %s131 = sand.u32 %s19, 1
          %s132 = sand.u32 %s19, 1
          %s133 = smul.addr %s132, 40
          %s134 = scalar_lea.vmem [#allocation2], %s133
          %s135 = smul.u32 2, %s9
          %s136 = smul.addr %s135, 4
          %s137 = scalar_lea.vmem %s0, %s136
          // Predicated region
          $region29: #{ckn_layer_forward.1} parent=27 // pred_check
            _
          $region30: #{ckn_layer_forward.1} parent=27 // pred_check_branch
            %139 = sbr.rel (0) target = $region32
          $region31: #{ckn_layer_forward.1} parent=27 // pred_region
            // Predicated region
            $region33: #{ckn_layer_forward.1} parent=31 // pred_check
              _
            $region34: #{ckn_layer_forward.1} parent=31 // pred_check_branch
              %141 = sbr.rel (0) target = $region36
            $region35: #{ckn_layer_forward.1} parent=31 // pred_region
              // Predicated region
              $region48: #{ckn_layer_forward.1} parent=35 // pred_check
                _
              $region49: #{ckn_layer_forward.1} parent=35 // pred_check_branch
                %165 = sbr.rel (0) target = $region51
              $region50: #{ckn_layer_forward.1} parent=35 // pred_region
                loop: start=0, step=1, limit=1
                $region52: #{ckn_layer_forward.1} parent=50 // loop_pre_header
                  _
                $region53: #{ckn_layer_forward.1} parent=50 // loop_header
                  %s167 = sphi 0, %s171
                  %p168 = scmp.ge.s32.totalorder %s167, 1
                  %s172 = sphi %s137, %s137
                  %s173 = sphi %s134, %s134
                $region54: #{ckn_layer_forward.1} parent=50 // loop_header_branch
                  %170 = sbr.rel (%p168) target = $region58
                $region55: #{ckn_layer_forward.1} parent=50 // loop_body
                  %v174 = vld [vmem:[%s172] sm:$0xff]
                  %175 = vst [vmem:[%s173] sm:$0xff] %v174
                  %v176 = vld [vmem:[%s172 + $0x10] sm:$0xff]
                  %177 = vst [vmem:[%s173 + $0x8] sm:$0xff] %v176
                  %v178 = vld [vmem:[%s172 + $0x20] sm:$0xff]
                  %179 = vst [vmem:[%s173 + $0x10] sm:$0xff] %v178
                  %v180 = vld [vmem:[%s172 + $0x30] sm:$0xff]
                  %181 = vst [vmem:[%s173 + $0x18] sm:$0xff] %v180
                  %v182 = vld [vmem:[%s172 + $0x40] sm:$0xff]
                  %183 = vst [vmem:[%s173 + $0x20] sm:$0xff] %v182
                $region56: #{ckn_layer_forward.1} parent=50 // loop_footer
                  %s171 = sadd.s32 1, %s167
                $region57: #{ckn_layer_forward.1} parent=50 // loop_footer_branch
                  %166 = sbr.rel target = $region53
                $region58: #{ckn_layer_forward.1} parent=50 // loop_exit
                  _
              $region51: #{ckn_layer_forward.1} parent=35 // pred_fallthru
                _
              // Predicated region
              $region59: #{ckn_layer_forward.1} parent=35 // pred_check
                _
              $region60: #{ckn_layer_forward.1} parent=35 // pred_check_branch
                %185 = sbr.rel target = $region62
              $region61: #{ckn_layer_forward.1} parent=35 // pred_region
                _
              $region62: #{ckn_layer_forward.1} parent=35 // pred_fallthru
                _
            $region36: #{ckn_layer_forward.1} parent=31 // pred_fallthru
              _
            // Predicated region
            $region37: #{ckn_layer_forward.1} parent=31 // pred_check
              _
            $region38: #{ckn_layer_forward.1} parent=31 // pred_check_branch
              %143 = sbr.rel target = $region40
            $region39: #{ckn_layer_forward.1} parent=31 // pred_region
              %s145 = ssub.s32 256, 1
              loop: start=0, step=1, limit=1
              $region41: #{ckn_layer_forward.1} parent=39 // loop_pre_header
                _
              $region42: #{ckn_layer_forward.1} parent=39 // loop_header
                %s147 = sphi 0, %s151
                %p148 = scmp.ge.s32.totalorder %s147, 1
                %s152 = sphi %s137, %s137
                %s153 = sphi %s134, %s134
              $region43: #{ckn_layer_forward.1} parent=39 // loop_header_branch
                %150 = sbr.rel (%p148) target = $region47
              $region44: #{ckn_layer_forward.1} parent=39 // loop_body
                %v154 = vld [vmem:[%s152] sm:%s145]
                %155 = vst [vmem:[%s153] sm:%s145] %v154
                %v156 = vld [vmem:[%s152 + $0x10] sm:%s145]
                %157 = vst [vmem:[%s153 + $0x8] sm:%s145] %v156
                %v158 = vld [vmem:[%s152 + $0x20] sm:%s145]
                %159 = vst [vmem:[%s153 + $0x10] sm:%s145] %v158
                %v160 = vld [vmem:[%s152 + $0x30] sm:%s145]
                %161 = vst [vmem:[%s153 + $0x18] sm:%s145] %v160
                %v162 = vld [vmem:[%s152 + $0x40] sm:%s145]
                %163 = vst [vmem:[%s153 + $0x20] sm:%s145] %v162
              $region45: #{ckn_layer_forward.1} parent=39 // loop_footer
                %s151 = sadd.s32 1, %s147
              $region46: #{ckn_layer_forward.1} parent=39 // loop_footer_branch
                %146 = sbr.rel target = $region42
              $region47: #{ckn_layer_forward.1} parent=39 // loop_exit
                _
            $region40: #{ckn_layer_forward.1} parent=31 // pred_fallthru
              _
          $region32: #{ckn_layer_forward.1} parent=27 // pred_fallthru
            _
          %186 = vnop
        $region28: #{ckn_layer_forward.1} parent=23 // pred_fallthru
          _
      $region24: #{ckn_layer_forward.1} parent=5 // pred_fallthru
        _
      %p187 = scmp.le.s32.totalorder 1, %s9
      %p188 = scmp.lt.s32.totalorder %s9, 3
      %p189 = pnand %p187, %p188
      %p190 = pneg %p189
      // Predicated region
      $region63: #{ckn_layer_forward.1} parent=5 // pred_check
        _
      $region64: #{ckn_layer_forward.1} parent=5 // pred_check_branch
        %192 = sbr.rel (%p189) target = $region66
      $region65: #{ckn_layer_forward.1} parent=5 // pred_region
        %s193 = ssub.s32 %s9, 1
        %s194 = sand.u32 %s22, 1
        %s195 = sand.u32 %s22, 1
        %s196 = smul.addr %s195, 40
        %s197 = scalar_lea.vmem [#allocation2], %s196
        // Predicated region
        $region67: #{ckn_layer_forward.1} parent=65 // pred_check
          %p198 = pneg %p35
        $region68: #{ckn_layer_forward.1} parent=65 // pred_check_branch
          %200 = sbr.rel (%p198) target = $region70
        $region69: #{ckn_layer_forward.1} parent=65 // pred_region
          _
        $region70: #{ckn_layer_forward.1} parent=65 // pred_fallthru
          _
        %s201 = sand.u32 %s22, 1
        %s202 = sand.u32 %s22, 1
        %s203 = smul.addr %s202, 40
        %s204 = scalar_lea.vmem [#allocation2], %s203
        %p205 = pneg %p35
        %p206 = pneg %p32
        %p207 = pneg %p56
        %p208 = pneg %p53
        %p209 = pneg %p77
        %p210 = pneg %p74
        %p211 = pneg %p103
        %p212 = pneg %p100
        %s213 = sand.u32 %s90, 1
        %s214 = sand.u32 %s90, 1
        %s215 = smul.addr %s214, 32
        %s216 = scalar_lea.vmem [#allocation3], %s215
        %s217 = smul.u32 2, %s14
        %s218 = smul.u32 2, %s14
        %v221 = vld [vmem:[%s197] sm:$0xff]
        %v222 = vld [vmem:[%s197 + $0x8] sm:$0xff]
        %v223 = vld [vmem:[%s197 + $0x10] sm:$0xff]
        %v224 = vld [vmem:[%s197 + $0x18] sm:$0xff]
        %v225 = vld [vmem:[%s197 + $0x20] sm:$0x33]
        %v226 = vld [vmem:[%s1] sm:$0xf]
        %v227 = vld [vmem:[%s1 + $0x4] sm:$0xf]
        %v228 = vld [vmem:[%s1 + $0x8] sm:$0xf]
        %v229 = vld [vmem:[%s1 + $0xc] sm:$0xf]
        %v230 = vld [vmem:[%s2] sm:$0xf]
        %v231 = vld [vmem:[%s2 + $0x4] sm:$0xf]
        %v232 = vld [vmem:[%s2 + $0x8] sm:$0xf]
        %v233 = vld [vmem:[%s2 + $0xc] sm:$0xf]
        %v234 = vmul.bf16 %v221, %v221
        %v235 = vmul.bf16 %v222, %v222
        %v236 = vmul.bf16 %v223, %v223
        %v237 = vmul.bf16 %v224, %v224
        %v238 = vmul.bf16 %v225, %v225
        %v244 = vunpack.c.l.b16 %v234
        %v245 = vunpack.c.h.b16 %v234
        %v246 = vunpack.c.l.b16 %v235
        %v247 = vunpack.c.h.b16 %v235
        %v248 = vunpack.c.l.b16 %v236
        %v249 = vunpack.c.h.b16 %v236
        %v250 = vunpack.c.l.b16 %v237
        %v251 = vunpack.c.h.b16 %v237
        %v252 = vunpack.c.l.b16 %v238
        %v253 = vunpack.c.h.b16 %v238
        %v254 = vpack.c.b16 %v246, %v244
        %v255 = vpack.c.b16 %v247, %v245
        %v256 = vpack.c.b16 %v250, %v248
        %v257 = vpack.c.b16 %v251, %v249
        %v258 = vpack.c.b16 %v252, %v252
        %v259 = vpack.c.b16 %v253, %v253
        %vm264 = vcmask 293888
        %v266 = vsel %vm264, 1065369472, 0
        %vm268 = vcmask 1041408
        %v270 = vsel %vm268, %v258, 0
        %v273 = vsel %vm268, %v259, 0
        %275 = vmatprep.subr.bf16.mxu0 0
        %276 = vmatpush1.bf16.msra.mxu0 0
        %277 = vmatprep.subr.bf16.mxu0 0
        %278 = vmatpush1.bf16.msra.mxu0 0
        %279 = vmatprep.subr.bf16.mxu0 0
        %280 = vmatpush1.bf16.msra.mxu0 0
        %281 = vmatprep.subr.bf16.mxu0 0
        %282 = vmatpush1.bf16.msra.mxu0 0
        %283 = vmatprep.subr.bf16.mxu0 0
        %284 = vmatpush1.bf16.msra.mxu0 0
        %285 = vmatprep.subr.bf16.mxu0 %v273
        %286 = vmatpush1.bf16.msra.mxu0 %v270
        %287 = vmatprep.subr.bf16.mxu0 %v257
        %288 = vmatpush1.bf16.msra.mxu0 %v256
        %289 = vmatprep.subr.bf16.mxu0 %v255
        %290 = vmatpush1.bf16.msra.mxu0 %v254
        %291 = vmatprep.subr.bf16.mxu0 0
        %292 = vmatpush2.bf16.msra.mxu0 0
        %293 = vmatprep.subr.bf16.mxu0 0
        %294 = vmatpush2.bf16.msra.mxu0 0
        %295 = vmatprep.subr.bf16.mxu0 0
        %296 = vmatpush2.bf16.msra.mxu0 0
        %297 = vmatprep.subr.bf16.mxu0 0
        %298 = vmatpush2.bf16.msra.mxu0 0
        %299 = vmatprep.subr.bf16.mxu0 0
        %300 = vmatpush2.bf16.msra.mxu0 0
        %301 = vmatprep.subr.bf16.mxu0 0
        %302 = vmatpush2.bf16.msra.mxu0 0
        %303 = vmatprep.subr.bf16.mxu0 0
        %304 = vmatpush2.bf16.msra.mxu0 0
        %305 = vmatprep.subr.bf16.mxu0 0
        %306 = vmatpush2.bf16.msra.mxu0 0
        %307 = vmatprep.mubr.bf16.mxu0 0
        %308 = vmatmul.mubr.bf16.gmra.mxu0 %v266
        %v309 = vpop.f32.mrf.mxu0
        %v310 = vadd.f32 0.0, %v309
        %v311 = vpop.f32.mrf.mxu0
        %v312 = vadd.f32 0.0, %v311
        %v313 = vpop.f32.mrf.mxu0
        %v314 = vpop.f32.mrf.mxu0
        %315 = vdwg.mxu0
        %v316 = vmax.f32 %v310, 1e-20
        %v317 = vmax.f32 %v312, 1e-20
        %v318 = vrsqrt.pop %v316
        %v319 = vrsqrt.pop %v317
        %v320 = vmul.f32 %v316, %v318
        %v321 = vmul.f32 %v317, %v319
        %v326 = vunpack.c.l.b16 %v226
        %v327 = vunpack.c.l.b16 %v227
        %v328 = vunpack.c.l.b16 %v228
        %v329 = vunpack.c.l.b16 %v229
        %v330 = vpack.c.b16 %v327, %v326
        %v331 = vpack.c.b16 %v329, %v328
        %v337 = vunpack.c.l.b16 %v221
        %v338 = vunpack.c.h.b16 %v221
        %v339 = vunpack.c.l.b16 %v222
        %v340 = vunpack.c.h.b16 %v222
        %v341 = vunpack.c.l.b16 %v223
        %v342 = vunpack.c.h.b16 %v223
        %v343 = vunpack.c.l.b16 %v224
        %v344 = vunpack.c.h.b16 %v224
        %v345 = vunpack.c.l.b16 %v225
        %v346 = vunpack.c.h.b16 %v225
        %v347 = vpack.c.b16 %v339, %v337
        %v348 = vpack.c.b16 %v340, %v338
        %v349 = vpack.c.b16 %v343, %v341
        %v350 = vpack.c.b16 %v344, %v342
        %v351 = vpack.c.b16 %v345, %v345
        %v352 = vpack.c.b16 %v346, %v346
        %v358 = vsel %vm264, %v330, 0
        %v361 = vsel %vm264, %v331, 0
        %v364 = vsel %vm268, %v351, 0
        %v367 = vsel %vm268, %v352, 0
        %369 = vmatprep.subr.bf16.mxu0 0
        %370 = vmatpush1.bf16.msra.mxu0 0
        %371 = vmatprep.subr.bf16.mxu0 0
        %372 = vmatpush1.bf16.msra.mxu0 0
        %373 = vmatprep.subr.bf16.mxu0 0
        %374 = vmatpush1.bf16.msra.mxu0 0
        %375 = vmatprep.subr.bf16.mxu0 0
        %376 = vmatpush1.bf16.msra.mxu0 0
        %377 = vmatprep.subr.bf16.mxu0 0
        %378 = vmatpush1.bf16.msra.mxu0 0
        %379 = vmatprep.subr.bf16.mxu0 %v367
        %380 = vmatpush1.bf16.msra.mxu0 %v364
        %381 = vmatprep.subr.bf16.mxu0 %v350
        %382 = vmatpush1.bf16.msra.mxu0 %v349
        %383 = vmatprep.subr.bf16.mxu0 %v348
        %384 = vmatpush1.bf16.msra.mxu0 %v347
        %385 = vmatprep.subr.bf16.mxu0 0
        %386 = vmatpush2.bf16.msra.mxu0 0
        %387 = vmatprep.subr.bf16.mxu0 0
        %388 = vmatpush2.bf16.msra.mxu0 0
        %389 = vmatprep.subr.bf16.mxu0 0
        %390 = vmatpush2.bf16.msra.mxu0 0
        %391 = vmatprep.subr.bf16.mxu0 0
        %392 = vmatpush2.bf16.msra.mxu0 0
        %393 = vmatprep.subr.bf16.mxu0 0
        %394 = vmatpush2.bf16.msra.mxu0 0
        %395 = vmatprep.subr.bf16.mxu0 0
        %396 = vmatpush2.bf16.msra.mxu0 0
        %397 = vmatprep.subr.bf16.mxu0 0
        %398 = vmatpush2.bf16.msra.mxu0 0
        %399 = vmatprep.subr.bf16.mxu0 0
        %400 = vmatpush2.bf16.msra.mxu0 0
        %401 = vmatprep.mubr.bf16.mxu0 0
        %402 = vmatmul.mubr.bf16.gmra.mxu0 %v358
        %v403 = vpop.f32.mrf.mxu0
        %v404 = vadd.f32 0.0, %v403
        %v405 = vpop.f32.mrf.mxu0
        %v406 = vadd.f32 0.0, %v405
        %v407 = vpop.f32.mrf.mxu0
        %v408 = vadd.f32 0.0, %v407
        %v409 = vpop.f32.mrf.mxu0
        %v410 = vadd.f32 0.0, %v409
        %411 = vmatprep.mubr.bf16.mxu0 0
        %412 = vmatmul.mubr.bf16.gmra.mxu0 %v361
        %v413 = vpop.f32.mrf.mxu0
        %v414 = vadd.f32 0.0, %v413
        %v415 = vpop.f32.mrf.mxu0
        %v416 = vadd.f32 0.0, %v415
        %v417 = vpop.f32.mrf.mxu0
        %v418 = vadd.f32 0.0, %v417
        %v419 = vpop.f32.mrf.mxu0
        %v420 = vadd.f32 0.0, %v419
        %421 = vdwg.mxu0
        %v422 = vlaneseq
        %v423 = vshrl.u32 %v422, 7
        %v424 = vsub.s32 0, %v423
        %v425 = vrot.slane %v318, %v424
        %v426 = vlaneseq
        %v427 = vshrl.u32 %v426, 7
        %v428 = vsub.s32 0, %v427
        %v429 = vrot.slane %v319, %v428
        %v430 = vmul.f32 %v404, %v425
        %v431 = vmul.f32 %v406, %v429
        %v432 = vmul.f32 %v408, %v425
        %v433 = vmul.f32 %v410, %v429
        %v434 = vmul.f32 %v414, %v425
        %v435 = vmul.f32 %v416, %v429
        %v436 = vmul.f32 %v418, %v425
        %v437 = vmul.f32 %v420, %v429
        %v438 = vmul.f32 %v430, 1.442695
        %v439 = vpow.pop %v438
        %v440 = vmul.f32 %v431, 1.442695
        %v441 = vpow.pop %v440
        %v442 = vmul.f32 %v432, 1.442695
        %v443 = vpow.pop %v442
        %v444 = vmul.f32 %v433, 1.442695
        %v445 = vpow.pop %v444
        %v446 = vmul.f32 %v434, 1.442695
        %v447 = vpow.pop %v446
        %v448 = vmul.f32 %v435, 1.442695
        %v449 = vpow.pop %v448
        %v450 = vmul.f32 %v436, 1.442695
        %v451 = vpow.pop %v450
        %v452 = vmul.f32 %v437, 1.442695
        %v453 = vpow.pop %v452
        %v454 = vpack.c.bf16 %v443, %v439
        %v455 = vpack.c.bf16 %v445, %v441
        %v456 = vpack.c.bf16 %v451, %v447
        %v457 = vpack.c.bf16 %v453, %v449
        %v462 = vunpack.c.l.b16 %v230
        %v463 = vunpack.c.l.b16 %v231
        %v464 = vunpack.c.l.b16 %v232
        %v465 = vunpack.c.l.b16 %v233
        %v466 = vpack.c.b16 %v463, %v462
        %v467 = vpack.c.b16 %v465, %v464
        %vm468 = vcmask 261120
        %v470 = vsel %vm468, %v466, 0
        %v473 = vsel %vm468, %v467, 0
        %475 = vmatprep.subr.bf16.mxu0 0
        %476 = vmatpush1.bf16.msra.mxu0 0
        %477 = vmatprep.subr.bf16.mxu0 0
        %478 = vmatpush1.bf16.msra.mxu0 0
        %479 = vmatprep.subr.bf16.mxu0 0
        %480 = vmatpush1.bf16.msra.mxu0 0
        %481 = vmatprep.subr.bf16.mxu0 0
        %482 = vmatpush1.bf16.msra.mxu0 0
        %483 = vmatprep.subr.bf16.mxu0 0
        %484 = vmatpush1.bf16.msra.mxu0 0
        %485 = vmatprep.subr.bf16.mxu0 0
        %486 = vmatpush1.bf16.msra.mxu0 0
        %487 = vmatprep.subr.bf16.mxu0 %v457
        %488 = vmatpush1.bf16.msra.mxu0 %v456
        %489 = vmatprep.subr.bf16.mxu0 %v455
        %490 = vmatpush1.bf16.msra.mxu0 %v454
        %491 = vmatprep.subr.bf16.mxu0 0
        %492 = vmatpush2.bf16.msra.mxu0 0
        %493 = vmatprep.subr.bf16.mxu0 0
        %494 = vmatpush2.bf16.msra.mxu0 0
        %495 = vmatprep.subr.bf16.mxu0 0
        %496 = vmatpush2.bf16.msra.mxu0 0
        %497 = vmatprep.subr.bf16.mxu0 0
        %498 = vmatpush2.bf16.msra.mxu0 0
        %499 = vmatprep.subr.bf16.mxu0 0
        %500 = vmatpush2.bf16.msra.mxu0 0
        %501 = vmatprep.subr.bf16.mxu0 0
        %502 = vmatpush2.bf16.msra.mxu0 0
        %503 = vmatprep.subr.bf16.mxu0 0
        %504 = vmatpush2.bf16.msra.mxu0 0
        %505 = vmatprep.subr.bf16.mxu0 0
        %506 = vmatpush2.bf16.msra.mxu0 0
        %507 = vmatprep.mubr.bf16.mxu0 0
        %508 = vmatmul.mubr.bf16.gmra.mxu0 %v470
        %v509 = vpop.f32.mrf.mxu0
        %v510 = vadd.f32 0.0, %v509
        %v511 = vpop.f32.mrf.mxu0
        %v512 = vadd.f32 0.0, %v511
        %v513 = vpop.f32.mrf.mxu0
        %v514 = vadd.f32 0.0, %v513
        %v515 = vpop.f32.mrf.mxu0
        %v516 = vadd.f32 0.0, %v515
        %517 = vmatprep.mubr.bf16.mxu0 0
        %518 = vmatmul.mubr.bf16.gmra.mxu0 %v473
        %v519 = vpop.f32.mrf.mxu0
        %v520 = vadd.f32 0.0, %v519
        %v521 = vpop.f32.mrf.mxu0
        %v522 = vadd.f32 0.0, %v521
        %v523 = vpop.f32.mrf.mxu0
        %v524 = vadd.f32 0.0, %v523
        %v525 = vpop.f32.mrf.mxu0
        %v526 = vadd.f32 0.0, %v525
        %527 = vdwg.mxu0
        %v528 = vlaneseq
        %v529 = vshrl.u32 %v528, 7
        %v530 = vsub.s32 0, %v529
        %v531 = vrot.slane %v320, %v530
        %v532 = vlaneseq
        %v533 = vshrl.u32 %v532, 7
        %v534 = vsub.s32 0, %v533
        %v535 = vrot.slane %v321, %v534
        %v536 = vmul.f32 %v510, %v531
        %v537 = vmul.f32 %v512, %v535
        %v538 = vmul.f32 %v514, %v531
        %v539 = vmul.f32 %v516, %v535
        %v540 = vmul.f32 %v520, %v531
        %v541 = vmul.f32 %v522, %v535
        %v542 = vmul.f32 %v524, %v531
        %v543 = vmul.f32 %v526, %v535
        %v544 = vpack.c.bf16 %v538, %v536
        %v545 = vpack.c.bf16 %v539, %v537
        %v546 = vpack.c.bf16 %v542, %v540
        %v547 = vpack.c.bf16 %v543, %v541
        %v552 = vunpack.c.l.b16 %v544
        %v553 = vunpack.c.l.b16 %v545
        %v554 = vunpack.c.h.b16 %v544
        %v555 = vunpack.c.h.b16 %v545
        %v556 = vunpack.c.l.b16 %v546
        %v557 = vunpack.c.l.b16 %v547
        %v558 = vunpack.c.h.b16 %v546
        %v559 = vunpack.c.h.b16 %v547
        %v560 = vpack.c.b16 %v553, %v552
        %v561 = vpack.c.b16 %v555, %v554
        %v562 = vpack.c.b16 %v557, %v556
        %v563 = vpack.c.b16 %v559, %v558
        %568 = vst [vmem:[%s216] sm:$0xff] %v560
        %569 = vst [vmem:[%s216 + $0x8] sm:$0xff] %v561
        %570 = vst [vmem:[%s216 + $0x10] sm:$0xff] %v562
        %571 = vst [vmem:[%s216 + $0x18] sm:$0xff] %v563
        %s572 = sand.u32 %s90, 1
        %s573 = sand.u32 %s90, 1
        %s574 = smul.addr %s573, 32
        %s575 = scalar_lea.vmem [#allocation3], %s574
        // Predicated region
        $region71: #{ckn_layer_forward.1} parent=65 // pred_check
          %p576 = pneg %p100
        $region72: #{ckn_layer_forward.1} parent=65 // pred_check_branch
          %578 = sbr.rel (%p576) target = $region74
        $region73: #{ckn_layer_forward.1} parent=65 // pred_region
          %s579 = smul.u32 2, %s14
          %s580 = smul.addr %s579, 4
          %s581 = scalar_lea.vmem %s3, %s580
          // Predicated region
          $region75: #{ckn_layer_forward.1} parent=73 // pred_check
            _
          $region76: #{ckn_layer_forward.1} parent=73 // pred_check_branch
            %583 = sbr.rel (0) target = $region78
          $region77: #{ckn_layer_forward.1} parent=73 // pred_region
            // Predicated region
            $region79: #{ckn_layer_forward.1} parent=77 // pred_check
              _
            $region80: #{ckn_layer_forward.1} parent=77 // pred_check_branch
              %585 = sbr.rel (0) target = $region82
            $region81: #{ckn_layer_forward.1} parent=77 // pred_region
              // Predicated region
              $region94: #{ckn_layer_forward.1} parent=81 // pred_check
                _
              $region95: #{ckn_layer_forward.1} parent=81 // pred_check_branch
                %607 = sbr.rel (0) target = $region97
              $region96: #{ckn_layer_forward.1} parent=81 // pred_region
                loop: start=0, step=1, limit=1
                $region98: #{ckn_layer_forward.1} parent=96 // loop_pre_header
                  _
                $region99: #{ckn_layer_forward.1} parent=96 // loop_header
                  %s609 = sphi 0, %s613
                  %p610 = scmp.ge.s32.totalorder %s609, 1
                  %s614 = sphi %s575, %s575
                  %s615 = sphi %s581, %s581
                $region100: #{ckn_layer_forward.1} parent=96 // loop_header_branch
                  %612 = sbr.rel (%p610) target = $region104
                $region101: #{ckn_layer_forward.1} parent=96 // loop_body
                  %v616 = vld [vmem:[%s614] sm:$0xff]
                  %617 = vst [vmem:[%s615] sm:$0xff] %v616
                  %v618 = vld [vmem:[%s614 + $0x8] sm:$0xff]
                  %619 = vst [vmem:[%s615 + $0x10] sm:$0xff] %v618
                  %v620 = vld [vmem:[%s614 + $0x10] sm:$0xff]
                  %621 = vst [vmem:[%s615 + $0x20] sm:$0xff] %v620
                  %v622 = vld [vmem:[%s614 + $0x18] sm:$0xff]
                  %623 = vst [vmem:[%s615 + $0x30] sm:$0xff] %v622
                $region102: #{ckn_layer_forward.1} parent=96 // loop_footer
                  %s613 = sadd.s32 1, %s609
                $region103: #{ckn_layer_forward.1} parent=96 // loop_footer_branch
                  %608 = sbr.rel target = $region99
                $region104: #{ckn_layer_forward.1} parent=96 // loop_exit
                  _
              $region97: #{ckn_layer_forward.1} parent=81 // pred_fallthru
                _
              // Predicated region
              $region105: #{ckn_layer_forward.1} parent=81 // pred_check
                _
              $region106: #{ckn_layer_forward.1} parent=81 // pred_check_branch
                %625 = sbr.rel target = $region108
              $region107: #{ckn_layer_forward.1} parent=81 // pred_region
                _
              $region108: #{ckn_layer_forward.1} parent=81 // pred_fallthru
                _
            $region82: #{ckn_layer_forward.1} parent=77 // pred_fallthru
              _
            // Predicated region
            $region83: #{ckn_layer_forward.1} parent=77 // pred_check
              _
            $region84: #{ckn_layer_forward.1} parent=77 // pred_check_branch
              %587 = sbr.rel target = $region86
            $region85: #{ckn_layer_forward.1} parent=77 // pred_region
              %s589 = ssub.s32 256, 1
              loop: start=0, step=1, limit=1
              $region87: #{ckn_layer_forward.1} parent=85 // loop_pre_header
                _
              $region88: #{ckn_layer_forward.1} parent=85 // loop_header
                %s591 = sphi 0, %s595
                %p592 = scmp.ge.s32.totalorder %s591, 1
                %s596 = sphi %s575, %s575
                %s597 = sphi %s581, %s581
              $region89: #{ckn_layer_forward.1} parent=85 // loop_header_branch
                %594 = sbr.rel (%p592) target = $region93
              $region90: #{ckn_layer_forward.1} parent=85 // loop_body
                %v598 = vld [vmem:[%s596] sm:%s589]
                %599 = vst [vmem:[%s597] sm:%s589] %v598
                %v600 = vld [vmem:[%s596 + $0x8] sm:%s589]
                %601 = vst [vmem:[%s597 + $0x10] sm:%s589] %v600
                %v602 = vld [vmem:[%s596 + $0x10] sm:%s589]
                %603 = vst [vmem:[%s597 + $0x20] sm:%s589] %v602
                %v604 = vld [vmem:[%s596 + $0x18] sm:%s589]
                %605 = vst [vmem:[%s597 + $0x30] sm:%s589] %v604
              $region91: #{ckn_layer_forward.1} parent=85 // loop_footer
                %s595 = sadd.s32 1, %s591
              $region92: #{ckn_layer_forward.1} parent=85 // loop_footer_branch
                %590 = sbr.rel target = $region88
              $region93: #{ckn_layer_forward.1} parent=85 // loop_exit
                _
            $region86: #{ckn_layer_forward.1} parent=77 // pred_fallthru
              _
          $region78: #{ckn_layer_forward.1} parent=73 // pred_fallthru
            _
          %626 = vnop
        $region74: #{ckn_layer_forward.1} parent=65 // pred_fallthru
          _
      $region66: #{ckn_layer_forward.1} parent=5 // pred_fallthru
        _
      %p627 = scmp.le.s32.totalorder 2, %s9
      // Predicated region
      $region109: #{ckn_layer_forward.1} parent=5 // pred_check
        %p628 = pneg %p627
      $region110: #{ckn_layer_forward.1} parent=5 // pred_check_branch
        %630 = sbr.rel (%p628) target = $region112
      $region111: #{ckn_layer_forward.1} parent=5 // pred_region
        %s631 = ssub.s32 %s9, 2
        // Predicated region
        $region113: #{ckn_layer_forward.1} parent=111 // pred_check
          %p632 = pneg %p106
        $region114: #{ckn_layer_forward.1} parent=111 // pred_check_branch
          %634 = sbr.rel (%p632) target = $region116
        $region115: #{ckn_layer_forward.1} parent=111 // pred_region
          %s635 = sand.u32 %s91, 1
          %s636 = sand.u32 %s91, 1
          %s637 = smul.addr %s636, 32
          %s638 = scalar_lea.vmem [#allocation3], %s637
        $region116: #{ckn_layer_forward.1} parent=111 // pred_fallthru
          _
      $region112: #{ckn_layer_forward.1} parent=5 // pred_fallthru
        _
    $region6: #{ckn_layer_forward.1} parent=1 // loop_footer
      %s13 = sadd.s32 1, %s9
    $region7: #{ckn_layer_forward.1} parent=1 // loop_footer_branch
      %8 = sbr.rel target = $region3
    $region8: #{ckn_layer_forward.1} parent=1 // loop_exit
      _

</llo_original>
